<compile_context>
chip_gen: v6e
topology: v6e:2x2x1
jax: 0.10.0
libtpu: 0.0.40
codegen_flags: <defaults>
</compile_context>

<pallas_src>
import functools

import jax
import jax.numpy as jnp
from jax.experimental import pallas as pl
from jax.experimental.pallas import tpu as pltpu


def _cdiv(a, b):
    return -(-a // b)


# -------------------- fused loss kernel --------------------
def _fused_loss_kernel(logits_ref, labels_ref, pred_ref, gt_ref, vis_ref,
                       ce_out_ref, joint_out_ref, acc_ref,
                       *, n_valid, tile_n, tiles_per_split, beta):
    s = pl.program_id(0)   # split (parallel -> sharded across TensorCores on v7x)
    t = pl.program_id(1)   # row tile within the split (reduction axis, "arbitrary")

    # ---- per-split init ----
    @pl.when(t == 0)
    def _init():
        acc_ref[...] = jnp.zeros_like(acc_ref)
        joint_out_ref[...] = jnp.zeros_like(joint_out_ref)

    # ---- tiny joint smooth-L1 loss, computed exactly once; hides under the CE DMA stream ----
    @pl.when(jnp.logical_and(t == 0, s == 0))
    def _joint():
        pred = pred_ref[...].astype(jnp.float32)     # (M, D)
        gt = gt_ref[...].astype(jnp.float32)         # (M, D)
        vis = vis_ref[...].astype(jnp.float32)       # (M, 1)
        l1 = jnp.abs(pred - gt)
        jl = jnp.where(l1 < beta, 0.5 * l1 * l1 / beta, l1 - 0.5 * beta) * vis
        joint_out_ref[...] = jnp.full(joint_out_ref.shape, jnp.sum(jl),
                                      dtype=jnp.float32)

    # ---- token cross-entropy over this row tile (accumulate a SUM, not a mean) ----
    logits = logits_ref[...].astype(jnp.float32)     # (TILE_N, C), cast after VMEM load
    labels = labels_ref[...]                         # (TILE_N, 1) int32

    m = jnp.max(logits, axis=-1, keepdims=True)
    z = logits - m
    lse = jnp.log(jnp.sum(jnp.exp(z), axis=-1, keepdims=True))          # (TILE_N, 1)
    col = jax.lax.broadcasted_iota(jnp.int32, logits.shape, 1)
    picked = jnp.sum(jnp.where(col == labels, z, 0.0), axis=-1, keepdims=True)
    per_row = lse - picked                                              # (TILE_N, 1)

    # mask rows beyond the true row count (handles partial / out-of-range edge tiles;
    # garbage / NaN values in those rows are replaced by exactly 0.0)
    row = jax.lax.broadcasted_iota(jnp.int32, per_row.shape, 0)
    global_row = (s * tiles_per_split + t) * tile_n + row
    per_row = jnp.where(global_row < n_valid, per_row, 0.0)

    acc_ref[...] += per_row

    # ---- finalize: one reduce + a single lane-dense store per split ----
    @pl.when(t == tiles_per_split - 1)
    def _fin():
        ce_out_ref[...] = jnp.full(ce_out_ref.shape, jnp.sum(acc_ref[...]),
                                   dtype=jnp.float32)


# -------------------- Classifier_loss forward --------------------
def classifier_loss(p_logits, p_joints, g_logits, joints,
                    token_loss_w=1.0, joint_loss_w=1.0, beta=0.05,
                    num_splits=2, tile_n=None):
    B, T, C = p_logits.shape
    _, K, _ = p_joints.shape
    joint_dim = joints.shape[2] - 1
    n_rows = B * T
    M = B * K

    # Flatten only; NO dtype casts / padding of the big logits tensor here.
    logits2d = p_logits.reshape(n_rows, C)
    labels2d = g_logits.reshape(n_rows, 1).astype(jnp.int32)
    pred2d = p_joints[..., :joint_dim].reshape(M, joint_dim)
    gt2d = joints[..., :joint_dim].reshape(M, joint_dim)
    vis2d = joints[..., joint_dim:].reshape(M, 1)

    # ---- tiling: biggest block that comfortably fits VMEM with 2-deep buffering ----
    itemsize = jnp.dtype(logits2d.dtype).itemsize
    if tile_n is None:
        target_bytes = 4 << 20                        # ~4 MiB per logits block
        tile_n = target_bytes // max(1, C * itemsize)
        tile_n = int(max(8, min(1024, (tile_n // 8) * 8)))
    tile_n = int(max(8, min(tile_n, _cdiv(n_rows, 8) * 8)))
    num_splits = int(max(1, min(num_splits, _cdiv(n_rows, tile_n))))
    tiles_per_split = _cdiv(n_rows, num_splits * tile_n)

    kernel = functools.partial(
        _fused_loss_kernel,
        n_valid=n_rows, tile_n=tile_n, tiles_per_split=tiles_per_split,
        beta=float(beta))

    row_idx = lambda s, t: (s * tiles_per_split + t, 0)

    ce_parts, joint_parts = pl.pallas_call(
        kernel,
        out_shape=(
            jax.ShapeDtypeStruct((num_splits, 1, 128), jnp.float32),
            jax.ShapeDtypeStruct((num_splits, 1, 128), jnp.float32),
        ),
        grid_spec=pltpu.PrefetchScalarGridSpec(
            num_scalar_prefetch=0,
            grid=(num_splits, tiles_per_split),
            in_specs=[
                pl.BlockSpec((tile_n, C), row_idx),                    # logits tile
                pl.BlockSpec((tile_n, 1), row_idx),                    # labels tile
                pl.BlockSpec((M, joint_dim), lambda s, t: (0, 0)),     # pred (tiny, resident)
                pl.BlockSpec((M, joint_dim), lambda s, t: (0, 0)),     # gt   (tiny, resident)
                pl.BlockSpec((M, 1), lambda s, t: (0, 0)),             # visibility
            ],
            out_specs=(
                pl.BlockSpec((1, 1, 128), lambda s, t: (s, 0, 0)),     # CE partial sum / split
                pl.BlockSpec((1, 1, 128), lambda s, t: (s, 0, 0)),     # joint sum / split
            ),
            scratch_shapes=[pltpu.VMEM((tile_n, 1), jnp.float32)],     # running row-sum acc
        ),
        compiler_params=pltpu.CompilerParams(
            dimension_semantics=("parallel", "arbitrary")),
    )(logits2d, labels2d, pred2d, gt2d, vis2d)

    losses = []
    if token_loss_w > 0:
        token_loss = (jnp.sum(ce_parts[:, 0, 0]) / n_rows) * token_loss_w
        losses.append(token_loss)
    else:
        losses.append(None)
    if joint_loss_w > 0:
        joint_loss = (jnp.sum(joint_parts[:, 0, 0]) / (M * joint_dim)) * joint_loss_w
        losses.append(joint_loss)
    else:
        losses.append(None)
    return losses


# -------------------- reference (pure JAX) --------------------
def _reference(p_logits, p_joints, g_logits, joints,
               token_loss_w=1.0, joint_loss_w=1.0, beta=0.05):
    B, T, C = p_logits.shape
    logits = p_logits.reshape(B * T, C).astype(jnp.float32)
    labels = g_logits.reshape(B * T)
    logp = jax.nn.log_softmax(logits, axis=-1)
    tl = -jnp.mean(logp[jnp.arange(B * T), labels]) * token_loss_w

    joint_dim = joints.shape[2] - 1
    gt = joints[..., :joint_dim].astype(jnp.float32)
    vis = joints[..., joint_dim:].astype(jnp.float32)
    pred = p_joints[..., :joint_dim].astype(jnp.float32)
    l1 = jnp.abs(pred - gt)
    loss = jnp.where(l1 < beta, 0.5 * l1 ** 2 / beta, l1 - 0.5 * beta) * vis
    jl = loss.mean() * joint_loss_w
    return tl, jl


if __name__ == "__main__":
    key = jax.random.PRNGKey(0)

    def run_case(B, T, C, K, D, seed_key, **kw):
        k1, k2, k3, k4, k5 = jax.random.split(seed_key, 5)
        p_logits = jax.random.normal(k1, (B, T, C), dtype=jnp.float32)
        p_joints = jax.random.normal(k2, (B, K, D), dtype=jnp.float32)
        g_logits = jax.random.randint(k3, (B, T), 0, C, dtype=jnp.int32)
        gt_xy = jax.random.normal(k4, (B, K, D), dtype=jnp.float32)
        visible = jax.random.bernoulli(k5, 0.8, (B, K, 1)).astype(jnp.float32)
        joints = jnp.concatenate([gt_xy, visible], axis=-1)   # (B, K, D+1)

        token_l, joint_l = classifier_loss(p_logits, p_joints, g_logits, joints,
                                           token_loss_w=1.0, joint_loss_w=1.0,
                                           beta=0.05, **kw)
        token_l = jax.block_until_ready(token_l)
        joint_l = jax.block_until_ready(joint_l)

        ref_t, ref_j = _reference(p_logits, p_joints, g_logits, joints)
        assert jnp.allclose(token_l, ref_t, atol=1e-5, rtol=1e-5), (token_l, ref_t)
        assert jnp.allclose(joint_l, ref_j, atol=1e-5, rtol=1e-5), (joint_l, ref_j)

    k_a, k_b, k_c = jax.random.split(key, 3)
    # even row count, single block
    run_case(B=2, T=8, C=32, K=8, D=2, seed_key=k_a)
    # uneven row count -> exercises the edge-tile masking path (no wrapper pad)
    run_case(B=2, T=7, C=32, K=8, D=2, seed_key=k_b)
    # forced multi-split / multi-tile path with a partially OOB last tile
    run_case(B=2, T=13, C=32, K=6, D=3, seed_key=k_c, tile_n=8, num_splits=2)

    print("KERNEL_OK")
</pallas_src>

<mosaic_0001>
module attributes {stable_mosaic.version = 11 : i64} {
  func.func @_fused_loss_kernel(%arg0: i32, %arg1: i32, %arg2: memref<16x32xf32, #tpu.memory_space<vmem>>, %arg3: memref<16x1xi32, #tpu.memory_space<vmem>>, %arg4: memref<16x2xf32, #tpu.memory_space<vmem>>, %arg5: memref<16x2xf32, #tpu.memory_space<vmem>>, %arg6: memref<16x1xf32, #tpu.memory_space<vmem>>, %arg7: memref<1x1x128xf32, #tpu.memory_space<vmem>>, %arg8: memref<1x1x128xf32, #tpu.memory_space<vmem>>, %arg9: memref<16x1xf32, #tpu.memory_space<vmem>>) attributes {dimension_semantics = [#tpu.dimension_semantics<parallel>, #tpu.dimension_semantics<arbitrary>], iteration_bounds = array<i64: 1, 1>, scalar_prefetch = 0 : i64, scratch_operands = 1 : i64, tpu.core_type = #tpu.core_type<tc>, window_params = [{transform_indices = @transform_0, window_bounds = array<i64: 16, 32>}, {transform_indices = @transform_1, window_bounds = array<i64: 16, 1>}, {pipeline_mode = #tpu.pipeline_mode<synchronous>, transform_indices = @transform_2, window_bounds = array<i64: 16, 2>}, {pipeline_mode = #tpu.pipeline_mode<synchronous>, transform_indices = @transform_3, window_bounds = array<i64: 16, 2>}, {pipeline_mode = #tpu.pipeline_mode<synchronous>, transform_indices = @transform_4, window_bounds = array<i64: 16, 1>}, {transform_indices = @transform_5, window_bounds = array<i64: 1, 1, 128>}, {transform_indices = @transform_6, window_bounds = array<i64: 1, 1, 128>}]} {
    %c0_i32 = arith.constant 0 : i32
    %0 = arith.cmpi eq, %arg1, %c0_i32 : i32
    %1 = arith.extui %0 : i1 to i32
    %c0_i32_0 = arith.constant 0 : i32
    %2 = arith.cmpi ne, %1, %c0_i32_0 : i32
    scf.if %2 {
      %cst_18 = arith.constant 0.000000e+00 : f32
      %42 = vector.broadcast %cst_18 : f32 to vector<16x1xf32>
      %c0_19 = arith.constant 0 : index
      %c0_20 = arith.constant 0 : index
      %43 = vector.load %arg9[%c0_19, %c0_20] : memref<16x1xf32, #tpu.memory_space<vmem>>, vector<16x1xf32>
      tpu.vector_store %arg9[%c0_19, %c0_20], %42 {strides = array<i32>} : memref<16x1xf32, #tpu.memory_space<vmem>>, vector<16x1xf32>,
      %cst_21 = arith.constant 0.000000e+00 : f32
      %44 = vector.broadcast %cst_21 : f32 to vector<1x1x128xf32>
      %c0_22 = arith.constant 0 : index
      %c0_23 = arith.constant 0 : index
      %c0_24 = arith.constant 0 : index
      %45 = vector.load %arg8[%c0_22, %c0_23, %c0_24] : memref<1x1x128xf32, #tpu.memory_space<vmem>>, vector<1x1x128xf32>
      tpu.vector_store %arg8[%c0_22, %c0_23, %c0_24], %44 {strides = array<i32>} : memref<1x1x128xf32, #tpu.memory_space<vmem>>, vector<1x1x128xf32>,
    } else {
    }
    %c0_i32_1 = arith.constant 0 : i32
    %3 = arith.cmpi eq, %arg1, %c0_i32_1 : i32
    %c0_i32_2 = arith.constant 0 : i32
    %4 = arith.cmpi eq, %arg0, %c0_i32_2 : i32
    %5 = arith.andi %3, %4 : i1
    %6 = arith.extui %5 : i1 to i32
    %c0_i32_3 = arith.constant 0 : i32
    %7 = arith.cmpi ne, %6, %c0_i32_3 : i32
    scf.if %7 {
      %c0_18 = arith.constant 0 : index
      %c0_19 = arith.constant 0 : index
      %42 = vector.load %arg4[%c0_18, %c0_19] : memref<16x2xf32, #tpu.memory_space<vmem>>, vector<16x2xf32>
      %c0_20 = arith.constant 0 : index
      %c0_21 = arith.constant 0 : index
      %43 = vector.load %arg5[%c0_20, %c0_21] : memref<16x2xf32, #tpu.memory_space<vmem>>, vector<16x2xf32>
      %c0_22 = arith.constant 0 : index
      %c0_23 = arith.constant 0 : index
      %44 = vector.load %arg6[%c0_22, %c0_23] : memref<16x1xf32, #tpu.memory_space<vmem>>, vector<16x1xf32>
      %45 = arith.subf %42, %43 : vector<16x2xf32>
      %46 = math.absf %45 : vector<16x2xf32>
      %cst_24 = arith.constant 5.000000e-02 : f32
      %47 = vector.broadcast %cst_24 : f32 to vector<16x2xf32>
      %48 = arith.cmpf olt, %46, %47 : vector<16x2xf32>
      %cst_25 = arith.constant 5.000000e-01 : f32
      %49 = vector.broadcast %cst_25 : f32 to vector<16x2xf32>
      %50 = arith.mulf %49, %46 : vector<16x2xf32>
      %51 = arith.mulf %50, %46 : vector<16x2xf32>
      %cst_26 = arith.constant 5.000000e-02 : f32
      %52 = vector.broadcast %cst_26 : f32 to vector<16x2xf32>
      %53 = arith.divf %51, %52 : vector<16x2xf32>
      %cst_27 = arith.constant 2.500000e-02 : f32
      %54 = vector.broadcast %cst_27 : f32 to vector<16x2xf32>
      %55 = arith.subf %46, %54 : vector<16x2xf32>
      %56 = arith.select %48, %53, %55 : vector<16x2xi1>, vector<16x2xf32>
      %57 = vector.broadcast %44 : vector<16x1xf32> to vector<16x2xf32>
      %58 = arith.mulf %56, %57 : vector<16x2xf32>
      %59 = vector.shape_cast %58 : vector<16x2xf32> to vector<1x16x2xf32>
      %cst_28 = arith.constant dense<0.000000e+00> : vector<1xf32>
      %60 = vector.multi_reduction <add>, %59, %cst_28 [1, 2] : vector<1x16x2xf32> to vector<1xf32>
      %61 = vector.shape_cast %60 : vector<1xf32> to vector<1x1x1xf32>
      %62 = vector.extract %61[0, 0, 0] : f32 from vector<1x1x1xf32>
      %63 = vector.broadcast %62 : f32 to vector<1x1x128xf32>
      %c0_29 = arith.constant 0 : index
      %c0_30 = arith.constant 0 : index
      %c0_31 = arith.constant 0 : index
      %64 = vector.load %arg8[%c0_29, %c0_30, %c0_31] : memref<1x1x128xf32, #tpu.memory_space<vmem>>, vector<1x1x128xf32>
      tpu.vector_store %arg8[%c0_29, %c0_30, %c0_31], %63 {strides = array<i32>} : memref<1x1x128xf32, #tpu.memory_space<vmem>>, vector<1x1x128xf32>,
    } else {
    }
    %c0 = arith.constant 0 : index
    %c0_4 = arith.constant 0 : index
    %8 = vector.load %arg2[%c0, %c0_4] : memref<16x32xf32, #tpu.memory_space<vmem>>, vector<16x32xf32>
    %c0_5 = arith.constant 0 : index
    %c0_6 = arith.constant 0 : index
    %9 = vector.load %arg3[%c0_5, %c0_6] : memref<16x1xi32, #tpu.memory_space<vmem>>, vector<16x1xi32>
    %cst = arith.constant dense<0xFF800000> : vector<16xf32>
    %10 = vector.multi_reduction <maximumf>, %8, %cst [1] : vector<16x32xf32> to vector<16xf32>
    %11 = vector.shape_cast %10 : vector<16xf32> to vector<16x1xf32>
    %12 = vector.broadcast %11 : vector<16x1xf32> to vector<16x32xf32>
    %13 = arith.subf %8, %12 : vector<16x32xf32>
    %14 = math.exp %13 : vector<16x32xf32>
    %cst_7 = arith.constant dense<0.000000e+00> : vector<16xf32>
    %15 = vector.multi_reduction <add>, %14, %cst_7 [1] : vector<16x32xf32> to vector<16xf32>
    %16 = vector.shape_cast %15 : vector<16xf32> to vector<16x1xf32>
    %17 = math.log %16 : vector<16x1xf32>
    %18 = tpu.iota {dimensions = array<i32: 1>} : vector<16x32xi32>
    %19 = vector.broadcast %9 : vector<16x1xi32> to vector<16x32xi32>
    %20 = arith.cmpi eq, %18, %19 : vector<16x32xi32>
    %cst_8 = arith.constant 0.000000e+00 : f32
    %21 = vector.broadcast %cst_8 : f32 to vector<16x32xf32>
    %22 = arith.select %20, %13, %21 : vector<16x32xi1>, vector<16x32xf32>
    %cst_9 = arith.constant dense<0.000000e+00> : vector<16xf32>
    %23 = vector.multi_reduction <add>, %22, %cst_9 [1] : vector<16x32xf32> to vector<16xf32>
    %24 = vector.shape_cast %23 : vector<16xf32> to vector<16x1xf32>
    %25 = arith.subf %17, %24 : vector<16x1xf32>
    %26 = tpu.iota {dimensions = array<i32: 0>} : vector<16x1xi32>
    %c1_i32 = arith.constant 1 : i32
    %27 = arith.muli %arg0, %c1_i32 : i32
    %28 = arith.addi %27, %arg1 : i32
    %c16_i32 = arith.constant 16 : i32
    %29 = arith.muli %28, %c16_i32 : i32
    %30 = vector.broadcast %29 : i32 to vector<16x1xi32>
    %31 = arith.addi %30, %26 : vector<16x1xi32>
    %c16_i32_10 = arith.constant 16 : i32
    %32 = vector.broadcast %c16_i32_10 : i32 to vector<16x1xi32>
    %33 = arith.cmpi slt, %31, %32 : vector<16x1xi32>
    %cst_11 = arith.constant 0.000000e+00 : f32
    %34 = vector.broadcast %cst_11 : f32 to vector<16x1xf32>
    %35 = arith.select %33, %25, %34 : vector<16x1xi1>, vector<16x1xf32>
    %c0_12 = arith.constant 0 : index
    %c0_13 = arith.constant 0 : index
    %36 = vector.load %arg9[%c0_12, %c0_13] : memref<16x1xf32, #tpu.memory_space<vmem>>, vector<16x1xf32>
    %37 = arith.addf %36, %35 : vector<16x1xf32>
    %c0_14 = arith.constant 0 : index
    %c0_15 = arith.constant 0 : index
    %38 = vector.load %arg9[%c0_14, %c0_15] : memref<16x1xf32, #tpu.memory_space<vmem>>, vector<16x1xf32>
    tpu.vector_store %arg9[%c0_14, %c0_15], %37 {strides = array<i32>} : memref<16x1xf32, #tpu.memory_space<vmem>>, vector<16x1xf32>,
    %c0_i32_16 = arith.constant 0 : i32
    %39 = arith.cmpi eq, %arg1, %c0_i32_16 : i32
    %40 = arith.extui %39 : i1 to i32
    %c0_i32_17 = arith.constant 0 : i32
    %41 = arith.cmpi ne, %40, %c0_i32_17 : i32
    scf.if %41 {
      %c0_18 = arith.constant 0 : index
      %c0_19 = arith.constant 0 : index
      %42 = vector.load %arg9[%c0_18, %c0_19] : memref<16x1xf32, #tpu.memory_space<vmem>>, vector<16x1xf32>
      %43 = vector.shape_cast %42 : vector<16x1xf32> to vector<1x16x1xf32>
      %cst_20 = arith.constant dense<0.000000e+00> : vector<1xf32>
      %44 = vector.multi_reduction <add>, %43, %cst_20 [1, 2] : vector<1x16x1xf32> to vector<1xf32>
      %45 = vector.shape_cast %44 : vector<1xf32> to vector<1x1x1xf32>
      %46 = vector.extract %45[0, 0, 0] : f32 from vector<1x1x1xf32>
      %47 = vector.broadcast %46 : f32 to vector<1x1x128xf32>
      %c0_21 = arith.constant 0 : index
      %c0_22 = arith.constant 0 : index
      %c0_23 = arith.constant 0 : index
      %48 = vector.load %arg7[%c0_21, %c0_22, %c0_23] : memref<1x1x128xf32, #tpu.memory_space<vmem>>, vector<1x1x128xf32>
      tpu.vector_store %arg7[%c0_21, %c0_22, %c0_23], %47 {strides = array<i32>} : memref<1x1x128xf32, #tpu.memory_space<vmem>>, vector<1x1x128xf32>,
    } else {
    }
    return
  }
  func.func @transform_0(%arg0: i32, %arg1: i32) -> (i32, i32) {
    %c1_i32 = arith.constant 1 : i32
    %0 = arith.muli %arg0, %c1_i32 : i32
    %1 = arith.addi %0, %arg1 : i32
    %c0_i32 = arith.constant 0 : i32
    %c0_i32_0 = arith.constant 0 : i32
    return %1, %c0_i32 : i32, i32
  }
  func.func @transform_1(%arg0: i32, %arg1: i32) -> (i32, i32) {
    %c1_i32 = arith.constant 1 : i32
    %0 = arith.muli %arg0, %c1_i32 : i32
    %1 = arith.addi %0, %arg1 : i32
    %c0_i32 = arith.constant 0 : i32
    %c0_i32_0 = arith.constant 0 : i32
    return %1, %c0_i32 : i32, i32
  }
  func.func @transform_2(%arg0: i32, %arg1: i32) -> (i32, i32) {
    %c0_i32 = arith.constant 0 : i32
    %c0_i32_0 = arith.constant 0 : i32
    %c0_i32_1 = arith.constant 0 : i32
    return %c0_i32, %c0_i32_0 : i32, i32
  }
  func.func @transform_3(%arg0: i32, %arg1: i32) -> (i32, i32) {
    %c0_i32 = arith.constant 0 : i32
    %c0_i32_0 = arith.constant 0 : i32
    %c0_i32_1 = arith.constant 0 : i32
    return %c0_i32, %c0_i32_0 : i32, i32
  }
  func.func @transform_4(%arg0: i32, %arg1: i32) -> (i32, i32) {
    %c0_i32 = arith.constant 0 : i32
    %c0_i32_0 = arith.constant 0 : i32
    %c0_i32_1 = arith.constant 0 : i32
    return %c0_i32, %c0_i32_0 : i32, i32
  }
  func.func @transform_5(%arg0: i32, %arg1: i32) -> (i32, i32, i32) {
    %c0_i32 = arith.constant 0 : i32
    %c0_i32_0 = arith.constant 0 : i32
    %c0_i32_1 = arith.constant 0 : i32
    return %arg0, %c0_i32, %c0_i32_0 : i32, i32, i32
  }
  func.func @transform_6(%arg0: i32, %arg1: i32) -> (i32, i32, i32) {
    %c0_i32 = arith.constant 0 : i32
    %c0_i32_0 = arith.constant 0 : i32
    %c0_i32_1 = arith.constant 0 : i32
    return %arg0, %c0_i32, %c0_i32_0 : i32, i32, i32
  }
}

</mosaic_0001>

<llo_original>
// kernel: tpu_custom_call.1
$region0: #{tpu_custom_call.1}
  #allocation0 [shape = 'u32[]', space=smem, size = 0x4, offset = 0x4, fixed_abs, tag = 'smem constant byte address 0x4 - core index']
  #allocation1 [shape = 'u32[144,128]{1,0:T(1,128)}', space=vmem, size = 0x12000, scoped, tag = 'internal scratch']
  #allocation2 [shape = 'f32[16,1]{1,0:T(8,128)}', space=vmem, size = 0x2000, scoped, tag = 'scratch operand']
  %s0 = inlined_call_operand.vmem [shape: f32[16,32], index: 0, kind: input, shape index: {}]
  %s1 = inlined_call_operand.vmem [shape: s32[16,1], index: 1, kind: input, shape index: {}]
  %s2 = inlined_call_operand.vmem [shape: f32[16,2], index: 2, kind: input, shape index: {}]
  %s3 = inlined_call_operand.vmem [shape: f32[16,2], index: 3, kind: input, shape index: {}]
  %s4 = inlined_call_operand.vmem [shape: f32[16,1], index: 4, kind: input, shape index: {}]
  %s5 = inlined_call_operand.hbm [shape: f32[1,1,128], index: 5, kind: output, shape index: {0}]
  %s6 = inlined_call_operand.hbm [shape: f32[1,1,128], index: 6, kind: output, shape index: {1}]
  %7 = xla_tuple %s5, %s6
  %s8 = sld [smem:[#allocation0]]
  $region50: #{tpu_custom_call.1} parent=0
    _
  %s10 = ssub.s32 1, %s8
  %s11 = scalar_select 0, %s10, %s8
  $region1: #{tpu_custom_call.1} parent=0
    #allocation3 [shape = 'u8[512]{0}', space=vmem, size = 0x400, scoped, tag = 'output window, operand 0, single buffered']
    #allocation4 [shape = 's32[1]{0}', space=sflag, size = 0x4, scoped, tag = 'scoped memory for tpu_custom_call.1']
    #allocation5 [shape = 'u8[512]{0}', space=vmem, size = 0x400, scoped, tag = 'output window, operand 1, single buffered']
    #allocation6 [shape = 's32[1]{0}', space=sflag, size = 0x4, scoped, tag = 'scoped memory for tpu_custom_call.1']
    %12 = vsyncpa [#allocation4], 0
    %13 = vsyncpa [#allocation6], 0
    // Predicated region
    $region2: #{tpu_custom_call.1} parent=1 // pred_check
      _
    $region3: #{tpu_custom_call.1} parent=1 // pred_check_branch
      %15 = sbr.rel (0) target = $region5
    $region4: #{tpu_custom_call.1} parent=1 // pred_region
      %s16 = sadd.s32 0, 0
      %s17 = smul.u32 2, %s16
      %p18 = scmp.lt.s32.totalorder %s17, 1
      %s19 = scalar_select %p18, %s17, 1
      %s20 = smul.addr %s19, 8
      %s21 = scalar_lea.vmem %s0, %s20
      %s22 = sadd.s32 0, 0
      %s23 = smul.u32 2, %s22
    $region5: #{tpu_custom_call.1} parent=1 // pred_fallthru
      _
    // Predicated region
    $region6: #{tpu_custom_call.1} parent=1 // pred_check
      _
    $region7: #{tpu_custom_call.1} parent=1 // pred_check_branch
      %25 = sbr.rel (0) target = $region9
    $region8: #{tpu_custom_call.1} parent=1 // pred_region
      %s26 = sadd.s32 0, 0
      %s27 = smul.u32 2, %s26
      %p28 = scmp.lt.s32.totalorder %s27, 1
      %s29 = scalar_select %p28, %s27, 1
      %s30 = smul.addr %s29, 8
      %s31 = scalar_lea.vmem %s1, %s30
      %s32 = sadd.s32 0, 0
      %s33 = smul.u32 2, %s32
    $region9: #{tpu_custom_call.1} parent=1 // pred_fallthru
      _
    // Predicated region
    $region10: #{tpu_custom_call.1} parent=1 // pred_check
      _
    $region11: #{tpu_custom_call.1} parent=1 // pred_check_branch
      %35 = sbr.rel (0) target = $region13
    $region12: #{tpu_custom_call.1} parent=1 // pred_region
      _
    $region13: #{tpu_custom_call.1} parent=1 // pred_fallthru
      _
    // Predicated region
    $region14: #{tpu_custom_call.1} parent=1 // pred_check
      _
    $region15: #{tpu_custom_call.1} parent=1 // pred_check_branch
      %37 = sbr.rel (0) target = $region17
    $region16: #{tpu_custom_call.1} parent=1 // pred_region
      _
    $region17: #{tpu_custom_call.1} parent=1 // pred_fallthru
      _
    // Predicated region
    $region18: #{tpu_custom_call.1} parent=1 // pred_check
      _
    $region19: #{tpu_custom_call.1} parent=1 // pred_check_branch
      %39 = sbr.rel (0) target = $region21
    $region20: #{tpu_custom_call.1} parent=1 // pred_region
      _
    $region21: #{tpu_custom_call.1} parent=1 // pred_fallthru
      _
    %s40 = sadd.s32 0, 0
    %s41 = smul.u32 2, %s40
    %p42 = scmp.lt.s32.totalorder %s41, 1
    %s43 = scalar_select %p42, %s41, 1
    %s44 = smul.addr %s43, 8
    %s45 = scalar_lea.vmem %s0, %s44
    %s46 = sadd.s32 0, 0
    %s47 = smul.u32 2, %s46
    %p48 = scmp.lt.s32.totalorder %s47, 1
    %s49 = scalar_select %p48, %s47, 1
    %s50 = smul.addr %s49, 8
    %s51 = scalar_lea.vmem %s1, %s50
    %s52 = sadd.s32 0, 0
    %s53 = smul.u32 2, %s52
    %p54 = scmp.lt.s32.totalorder %s53, 1
    %s55 = scalar_select %p54, %s53, 1
    %s56 = smul.addr %s55, 8
    %s57 = scalar_lea.vmem %s0, %s56
    %s58 = sadd.s32 0, 0
    %s59 = smul.u32 2, %s58
    %s60 = sadd.s32 0, 0
    %s61 = smul.u32 2, %s60
    %p62 = scmp.lt.s32.totalorder %s61, 1
    %s63 = scalar_select %p62, %s61, 1
    %s64 = smul.addr %s63, 8
    %s65 = scalar_lea.vmem %s1, %s64
    %s66 = sadd.s32 0, 0
    %s67 = smul.u32 2, %s66
    %p68 = scmp.eq.s32.totalorder 0, 0
    // Predicated region
    $region22: #{tpu_custom_call.1} parent=1 // pred_check
      %p69 = pneg %p68
    $region23: #{tpu_custom_call.1} parent=1 // pred_check_branch
      %71 = sbr.rel (%p69) target = $region25
    $region24: #{tpu_custom_call.1} parent=1 // pred_region
      %vm72 = vcmask 7168
      %73 = vst.msk [vmem:[#allocation2] sm:$0xff] %vm72, 0.0
      %74 = vst.msk [vmem:[#allocation2 + $0x8] sm:$0xff] %vm72, 0.0
      %75 = vst [vmem:[#allocation5] sm:$0x1] 0.0
    $region25: #{tpu_custom_call.1} parent=1 // pred_fallthru
      _
    %p76 = scmp.eq.s32.totalorder 0, 0
    %p77 = pnand %p68, %p76
    %p78 = pneg %p77
    // Predicated region
    $region26: #{tpu_custom_call.1} parent=1 // pred_check
      _
    $region27: #{tpu_custom_call.1} parent=1 // pred_check_branch
      %80 = sbr.rel (%p77) target = $region29
    $region28: #{tpu_custom_call.1} parent=1 // pred_region
      %v81 = vld [vmem:[%s2] sm:$0xff]
      %v82 = vld [vmem:[%s2 + $0x8] sm:$0xff]
      %v83 = vld [vmem:[%s3] sm:$0xff]
      %v84 = vld [vmem:[%s3 + $0x8] sm:$0xff]
      %v85 = vld [vmem:[%s4] sm:$0xff]
      %v86 = vld [vmem:[%s4 + $0x8] sm:$0xff]
      %v87 = vsub.f32 %v81, %v83
      %v88 = vsub.f32 %v82, %v84
      %v89 = vand.u32 2147483647, %v87
      %v90 = vand.u32 2147483647, %v88
      %vm91 = vcmp.lt.f32.partialorder %v89, 0.05
      %vm92 = vcmp.lt.f32.partialorder %v90, 0.05
      %v93 = vmul.f32 %v89, 0.5
      %v94 = vmul.f32 %v90, 0.5
      %v95 = vmul.f32 %v93, %v89
      %v96 = vmul.f32 %v94, %v90
      %v97 = vrcp.pop 0.05
      %v98 = vmul.f32 %v95, %v97
      %v99 = vmul.f32 %v96, %v97
      %v100 = vsub.f32 %v89, 0.025
      %v101 = vsub.f32 %v90, 0.025
      %v102 = vsel %vm91, %v98, %v100
      %v103 = vsel %vm92, %v99, %v101
      %105 = vset.pattern.permute.xlu0 0
      %106 = vperm.xlu0 %105, %v85
      %v107 = vpop.permute.xlu0 %106
      %110 = vset.pattern.permute.xlu0 0
      %111 = vperm.xlu0 %110, %v86
      %v112 = vpop.permute.xlu0 %111
      %v114 = vmul.f32 %v102, %v107
      %v115 = vmul.f32 %v103, %v112
      %vm116 = vcmask 15360
      %v117 = vsel %vm116, %v114, 0.0
      %v118 = vsel %vm116, %v115, 0.0
      %v119 = vadd.f32 %v117, %v118
      %120 = vadd.xlane.f32.xlu0 %v119
      %v121 = vpop.xlane.xlu0 %120
      %v122 = vrot.slane %v121, 4
      %v123 = vadd.f32 %v121, %v122
      %v124 = vrot.slane %v123, 2
      %v125 = vadd.f32 %v123, %v124
      %v126 = vrot.slane %v125, 1
      %v127 = vadd.f32 %v125, %v126
      %s128 = vtos %v127
      %v129 = vstv %s128
      %130 = vst [vmem:[#allocation5] sm:$0x1] %v129
    $region29: #{tpu_custom_call.1} parent=1 // pred_fallthru
      _
    %v131 = vld [vmem:[%s57] sm:$0xff]
    %v132 = vld [vmem:[%s57 + $0x8] sm:$0xff]
    %v133 = vld [vmem:[%s65] sm:$0xff]
    %v134 = vld [vmem:[%s65 + $0x8] sm:$0xff]
    %vm135 = vcmask 261120
    %v136 = vsel %vm135, %v131, -inf
    %137 = vmax.xlane.f32.xlu0 %v136
    %v138 = vpop.xlane.xlu0 %137
    %v139 = vsel %vm135, %v132, -inf
    %140 = vmax.xlane.f32.xlu0 %v139
    %v141 = vpop.xlane.xlu0 %140
    %v142 = vsub.f32 %v131, %v138
    %v143 = vsub.f32 %v132, %v141
    %v144 = vmul.f32 %v142, 1.442695
    %v145 = vpow.pop %v144
    %v146 = vmul.f32 %v143, 1.442695
    %v147 = vpow.pop %v146
    %v148 = vsel %vm135, %v145, 0.0
    %149 = vadd.xlane.f32.xlu0 %v148
    %v150 = vpop.xlane.xlu0 %149
    %v151 = vsel %vm135, %v147, 0.0
    %152 = vadd.xlane.f32.xlu0 %v151
    %v153 = vpop.xlane.xlu0 %152
    %v154 = vlog2.pop %v150
    %v155 = vmul.f32 %v154, 0.6931472
    %v156 = vlog2.pop %v153
    %v157 = vmul.f32 %v156, 0.6931472
    %v158 = vlaneseq
    %v159 = vand.u32 %v158, 127
    %160 = vset.pattern.permute.xlu0 0
    %161 = vperm.xlu0 %160, %v133
    %v162 = vpop.permute.xlu0 %161
    %163 = vset.pattern.permute.xlu0 0
    %164 = vperm.xlu0 %163, %v134
    %v165 = vpop.permute.xlu0 %164
    %vm166 = vcmp.eq.s32.totalorder %v159, %v162
    %vm167 = vcmp.eq.s32.totalorder %v159, %v165
    %v168 = vsel %vm166, %v142, 0.0
    %v169 = vsel %vm167, %v143, 0.0
    %v170 = vsel %vm135, %v168, 0.0
    %171 = vadd.xlane.f32.xlu0 %v170
    %v172 = vpop.xlane.xlu0 %171
    %v173 = vsel %vm135, %v169, 0.0
    %174 = vadd.xlane.f32.xlu0 %v173
    %v175 = vpop.xlane.xlu0 %174
    %v176 = vsub.f32 %v155, %v172
    %v177 = vsub.f32 %v157, %v175
    %v178 = vlaneseq
    %v179 = vshrl.u32 %v178, 7
    %v180 = vadd.s32 %v179, 8
    %s181 = sadd.s32 0, 0
    %s182 = smul.u32 %s181, 16
    %v183 = vstv %s182
    %v184 = vadd.s32 %v183, %v179
    %v185 = vadd.s32 %v183, %v180
    %vm186 = vcmp.lt.s32.totalorder %v184, 16
    %vm187 = vcmp.lt.s32.totalorder %v185, 16
    %v188 = vsel %vm186, %v176, 0.0
    %v189 = vsel %vm187, %v177, 0.0
    %v190 = vld [vmem:[#allocation2] sm:$0xff]
    %v191 = vld [vmem:[#allocation2 + $0x8] sm:$0xff]
    %v192 = vadd.f32 %v190, %v188
    %v193 = vadd.f32 %v191, %v189
    %vm194 = vcmask 7168
    %195 = vst.msk [vmem:[#allocation2] sm:$0xff] %vm194, %v192
    %196 = vst.msk [vmem:[#allocation2 + $0x8] sm:$0xff] %vm194, %v193
    // Predicated region
    $region30: #{tpu_custom_call.1} parent=1 // pred_check
      %p197 = pneg %p68
    $region31: #{tpu_custom_call.1} parent=1 // pred_check_branch
      %199 = sbr.rel (%p197) target = $region33
    $region32: #{tpu_custom_call.1} parent=1 // pred_region
      %v200 = vld [vmem:[#allocation2] sm:$0xff]
      %v201 = vld [vmem:[#allocation2 + $0x8] sm:$0xff]
      %v202 = vsel %vm194, %v200, 0.0
      %v203 = vsel %vm194, %v201, 0.0
      %v204 = vadd.f32 %v202, %v203
      %205 = vadd.xlane.f32.xlu0 %v204
      %v206 = vpop.xlane.xlu0 %205
      %v207 = vrot.slane %v206, 4
      %v208 = vadd.f32 %v206, %v207
      %v209 = vrot.slane %v208, 2
      %v210 = vadd.f32 %v208, %v209
      %v211 = vrot.slane %v210, 1
      %v212 = vadd.f32 %v210, %v211
      %s213 = vtos %v212
      %v214 = vstv %s213
      %215 = vst [vmem:[#allocation3] sm:$0x1] %v214
    $region33: #{tpu_custom_call.1} parent=1 // pred_fallthru
      _
    // Predicated region
    $region34: #{tpu_custom_call.1} parent=1 // pred_check
      _
    $region35: #{tpu_custom_call.1} parent=1 // pred_check_branch
      %217 = sbr.rel (0) target = $region37
    $region36: #{tpu_custom_call.1} parent=1 // pred_region
      %s219 = ssub.s32 16, 16
      %220 = vsyncadd [#allocation4], %s219
      %s222 = sshll.u32 [#allocation3], 4
      %s223 = int_to_ptr.vmem [resolvable:$true] %s222
      %225 = dma.vmem_to_hbm [thread:$0]  %s223, 16, %s5, [#allocation4]
    $region37: #{tpu_custom_call.1} parent=1 // pred_fallthru
      _
    // Predicated region
    $region38: #{tpu_custom_call.1} parent=1 // pred_check
      _
    $region39: #{tpu_custom_call.1} parent=1 // pred_check_branch
      %227 = sbr.rel (0) target = $region41
    $region40: #{tpu_custom_call.1} parent=1 // pred_region
      %s229 = ssub.s32 16, 16
      %230 = vsyncadd [#allocation6], %s229
      %s232 = sshll.u32 [#allocation5], 4
      %s233 = int_to_ptr.vmem [resolvable:$true] %s232
      %235 = dma.vmem_to_hbm [thread:$0]  %s233, 16, %s6, [#allocation6]
    $region41: #{tpu_custom_call.1} parent=1 // pred_fallthru
      _
    // Predicated region
    $region42: #{tpu_custom_call.1} parent=1 // pred_check
      _
    $region43: #{tpu_custom_call.1} parent=1 // pred_check_branch
      %237 = sbr.rel (0) target = $region45
    $region44: #{tpu_custom_call.1} parent=1 // pred_region
      %238 = dma.done [#allocation4], 16
    $region45: #{tpu_custom_call.1} parent=1 // pred_fallthru
      _
    // Predicated region
    $region46: #{tpu_custom_call.1} parent=1 // pred_check
      _
    $region47: #{tpu_custom_call.1} parent=1 // pred_check_branch
      %240 = sbr.rel (0) target = $region49
    $region48: #{tpu_custom_call.1} parent=1 // pred_region
      %241 = dma.done [#allocation6], 16
    $region49: #{tpu_custom_call.1} parent=1 // pred_fallthru
      _
    %242 = vsyncpa [#allocation4], 1
    %243 = vsyncpa [#allocation6], 1

</llo_original>
